<compile_context>
chip_gen: v6e
topology: v6e:2x2x1
jax: 0.10.0
libtpu: 0.0.40
codegen_flags: <defaults>
</compile_context>

<pallas_src>
import numpy as np
import jax
import jax.numpy as jnp
from jax.experimental import pallas as pl
from jax.experimental.pallas import tpu as pltpu

_RGB_FROM_HED = np.array(
    [[0.65, 0.70, 0.29],
     [0.07, 0.99, 0.11],
     [0.27, 0.57, 0.78]], dtype=np.float32)

_HED_FROM_RGB = np.linalg.inv(_RGB_FROM_HED)          # the nn.Parameter
_EPS = 1e-6
# Fold 1/log(eps) into the mixing matrix:  hed[j] = sum_i log(max(x_i,eps)) * M'[i,j]
_MAT_SCALED = (_HED_FROM_RGB / np.log(_EPS)).astype(np.float64)

_LANE = 128
_SUBLANE = 8
_MAX_ROWS_PER_BLOCK = 2048     # 3 * 2048 * 128 * 4B = 3 MiB input per grid step


def _make_stain_kernel(out_channels):
    """Build a kernel that emits only the requested stain channels.

    The scaled 3x3 matrix is baked in as Python float constants so the channel
    mix compiles to constant-coefficient VPU FMAs (no SMEM traffic, no divide).
    """
    coeffs = [(float(_MAT_SCALED[0, j]),
               float(_MAT_SCALED[1, j]),
               float(_MAT_SCALED[2, j])) for j in out_channels]

    def kernel(x_ref, o_ref):
        # x_ref: (1, 3, R, 128) VMEM block; each channel is a dense (R, 128) slab.
        log_r = jnp.log(jnp.maximum(x_ref[0, 0], _EPS))
        log_g = jnp.log(jnp.maximum(x_ref[0, 1], _EPS))
        log_b = jnp.log(jnp.maximum(x_ref[0, 2], _EPS))
        for out_idx, (cr, cg, cb) in enumerate(coeffs):
            o_ref[0, out_idx] = cr * log_r + cg * log_g + cb * log_b

    return kernel


def _stain_deconv_pallas(x, out_channels):
    """x: (N, 3, H, W) float32 in [0, 1]. Returns (N, len(out_channels), H, W)."""
    N, C, H, W = x.shape
    assert C == 3, "expected 3-channel RGB input"
    HW = H * W
    n_out = len(out_channels)

    # Lane-dense layout: flatten spatial, split into [rows, 128] slabs.
    rows_raw = pl.cdiv(HW, _LANE)
    # Rows per grid step: multiple of 8 (sublane), capped for VMEM safety (v7x).
    rows_block = min(pl.cdiv(rows_raw, _SUBLANE) * _SUBLANE, _MAX_ROWS_PER_BLOCK)
    rows = pl.cdiv(rows_raw, rows_block) * rows_block
    hw_pad = rows * _LANE

    xf = x.reshape(N, 3, HW).astype(jnp.float32)
    if hw_pad != HW:
        xf = jnp.pad(xf, ((0, 0), (0, 0), (0, hw_pad - HW)), constant_values=1.0)
    x4 = xf.reshape(N, 3, rows, _LANE)

    grid = (N, rows // rows_block)

    out = pl.pallas_call(
        _make_stain_kernel(out_channels),
        out_shape=jax.ShapeDtypeStruct((N, n_out, rows, _LANE), jnp.float32),
        grid=grid,
        in_specs=[
            pl.BlockSpec((1, 3, rows_block, _LANE), lambda n, s: (n, 0, s, 0)),
        ],
        out_specs=pl.BlockSpec((1, n_out, rows_block, _LANE),
                               lambda n, s: (n, 0, s, 0)),
        compiler_params=pltpu.CompilerParams(
            dimension_semantics=("parallel", "parallel")),
    )(x4)

    out = out.reshape(N, n_out, hw_pad)
    if hw_pad != HW:
        out = out[:, :, :HW]
    return out.reshape(N, n_out, H, W)


class ColorConverter:
    """JAX/Pallas port of the PyTorch ColorConverter module."""

    _MODE_CHANNELS = {"hed": (0, 1, 2), "h": (0,), "e": (1,)}

    def __init__(self, open_mode="rgb"):
        self.open_mode = open_mode.lower()
        if self.open_mode in ("h", "e", "hed"):
            # Kept for parity with the PyTorch parameter; the kernel bakes the
            # (scaled) constants in at trace time.
            self.conversion_matrix = jnp.asarray(_HED_FROM_RGB, dtype=jnp.float32)
        else:
            self.conversion_matrix = None

    def __call__(self, x):
        if self.open_mode == "rgb":
            return x
        if self.open_mode in self._MODE_CHANNELS:
            return _stain_deconv_pallas(x, self._MODE_CHANNELS[self.open_mode])
        raise ValueError(f"unsupported open_mode: {self.open_mode}")


def _rgb_to_hed_ref(x, mat):
    """Pure-JAX reference for correctness checking."""
    od = jnp.log(jnp.maximum(x, _EPS)) / jnp.log(jnp.float32(_EPS))  # (N, 3, H, W)
    return jnp.einsum("nihw,ij->njhw", od, mat)


if __name__ == "__main__":
    key = jax.random.PRNGKey(0)
    N, C, H, W = 2, 3, 16, 16
    x = jax.random.uniform(key, (N, C, H, W), dtype=jnp.float32)

    # identity path
    y_rgb = jax.block_until_ready(ColorConverter("rgb")(x))
    assert y_rgb.shape == x.shape

    # full-HED path (Pallas kernel)
    conv_hed = ColorConverter("hed")
    y_hed = jax.block_until_ready(conv_hed(x))
    assert y_hed.shape == (N, 3, H, W)

    y_ref = _rgb_to_hed_ref(x, conv_hed.conversion_matrix)
    np.testing.assert_allclose(np.asarray(y_hed), np.asarray(y_ref),
                               rtol=1e-5, atol=1e-5)

    # single-stain paths (kernel emits only the requested channel)
    y_h = jax.block_until_ready(ColorConverter("h")(x))
    y_e = jax.block_until_ready(ColorConverter("e")(x))
    assert y_h.shape == (N, 1, H, W) and y_e.shape == (N, 1, H, W)
    np.testing.assert_allclose(np.asarray(y_h), np.asarray(y_ref[:, 0:1]),
                               rtol=1e-5, atol=1e-5)
    np.testing.assert_allclose(np.asarray(y_e), np.asarray(y_ref[:, 1:2]),
                               rtol=1e-5, atol=1e-5)

    print("KERNEL_OK")
</pallas_src>

<mosaic_0001>
module attributes {stable_mosaic.version = 11 : i64} {
  func.func @kernel(%arg0: i32, %arg1: i32, %arg2: memref<1x3x8x128xf32, #tpu.memory_space<vmem>>, %arg3: memref<1x3x8x128xf32, #tpu.memory_space<vmem>>) attributes {dimension_semantics = [#tpu.dimension_semantics<parallel>, #tpu.dimension_semantics<parallel>], iteration_bounds = array<i64: 2, 1>, scalar_prefetch = 0 : i64, scratch_operands = 0 : i64, tpu.core_type = #tpu.core_type<tc>, window_params = [{transform_indices = @transform_0, window_bounds = array<i64: 1, 3, 8, 128>}, {transform_indices = @transform_1, window_bounds = array<i64: 1, 3, 8, 128>}]} {
    %c0 = arith.constant 0 : index
    %c0_0 = arith.constant 0 : index
    %c0_1 = arith.constant 0 : index
    %c0_2 = arith.constant 0 : index
    %0 = vector.load %arg2[%c0, %c0_0, %c0_1, %c0_2] : memref<1x3x8x128xf32, #tpu.memory_space<vmem>>, vector<1x1x8x128xf32>
    %1 = vector.shape_cast %0 : vector<1x1x8x128xf32> to vector<8x128xf32>
    %cst = arith.constant 9.99999997E-7 : f32
    %2 = vector.broadcast %cst : f32 to vector<8x128xf32>
    %3 = arith.maximumf %1, %2 : vector<8x128xf32>
    %4 = math.log %3 : vector<8x128xf32>
    %c0_3 = arith.constant 0 : index
    %c1 = arith.constant 1 : index
    %c0_4 = arith.constant 0 : index
    %c0_5 = arith.constant 0 : index
    %5 = vector.load %arg2[%c0_3, %c1, %c0_4, %c0_5] : memref<1x3x8x128xf32, #tpu.memory_space<vmem>>, vector<1x1x8x128xf32>
    %6 = vector.shape_cast %5 : vector<1x1x8x128xf32> to vector<8x128xf32>
    %cst_6 = arith.constant 9.99999997E-7 : f32
    %7 = vector.broadcast %cst_6 : f32 to vector<8x128xf32>
    %8 = arith.maximumf %6, %7 : vector<8x128xf32>
    %9 = math.log %8 : vector<8x128xf32>
    %c0_7 = arith.constant 0 : index
    %c2 = arith.constant 2 : index
    %c0_8 = arith.constant 0 : index
    %c0_9 = arith.constant 0 : index
    %10 = vector.load %arg2[%c0_7, %c2, %c0_8, %c0_9] : memref<1x3x8x128xf32, #tpu.memory_space<vmem>>, vector<1x1x8x128xf32>
    %11 = vector.shape_cast %10 : vector<1x1x8x128xf32> to vector<8x128xf32>
    %cst_10 = arith.constant 9.99999997E-7 : f32
    %12 = vector.broadcast %cst_10 : f32 to vector<8x128xf32>
    %13 = arith.maximumf %11, %12 : vector<8x128xf32>
    %14 = math.log %13 : vector<8x128xf32>
    %cst_11 = arith.constant -0.135932937 : f32
    %15 = vector.broadcast %cst_11 : f32 to vector<8x128xf32>
    %16 = arith.mulf %15, %4 : vector<8x128xf32>
    %cst_12 = arith.constant 0.0047705844 : f32
    %17 = vector.broadcast %cst_12 : f32 to vector<8x128xf32>
    %18 = arith.mulf %17, %9 : vector<8x128xf32>
    %19 = arith.addf %16, %18 : vector<8x128xf32>
    %cst_13 = arith.constant 0.0435675122 : f32
    %20 = vector.broadcast %cst_13 : f32 to vector<8x128xf32>
    %21 = arith.mulf %20, %14 : vector<8x128xf32>
    %22 = arith.addf %19, %21 : vector<8x128xf32>
    %c0_14 = arith.constant 0 : index
    %c0_15 = arith.constant 0 : index
    %c0_16 = arith.constant 0 : index
    %c0_17 = arith.constant 0 : index
    %23 = vector.load %arg3[%c0_14, %c0_15, %c0_16, %c0_17] : memref<1x3x8x128xf32, #tpu.memory_space<vmem>>, vector<1x1x8x128xf32>
    %24 = vector.shape_cast %23 : vector<1x1x8x128xf32> to vector<8x128xf32>
    %25 = vector.shape_cast %22 : vector<8x128xf32> to vector<1x1x8x128xf32>
    tpu.vector_store %arg3[%c0_14, %c0_15, %c0_16, %c0_17], %25 {strides = array<i32>} : memref<1x3x8x128xf32, #tpu.memory_space<vmem>>, vector<1x1x8x128xf32>,
    %cst_18 = arith.constant 0.0729382187 : f32
    %26 = vector.broadcast %cst_18 : f32 to vector<8x128xf32>
    %27 = arith.mulf %26, %4 : vector<8x128xf32>
    %cst_19 = arith.constant -0.0821345224 : f32
    %28 = vector.broadcast %cst_19 : f32 to vector<8x128xf32>
    %29 = arith.mulf %28, %9 : vector<8x128xf32>
    %30 = arith.addf %27, %29 : vector<8x128xf32>
    %cst_20 = arith.constant 0.034773536 : f32
    %31 = vector.broadcast %cst_20 : f32 to vector<8x128xf32>
    %32 = arith.mulf %31, %14 : vector<8x128xf32>
    %33 = arith.addf %30, %32 : vector<8x128xf32>
    %c0_21 = arith.constant 0 : index
    %c1_22 = arith.constant 1 : index
    %c0_23 = arith.constant 0 : index
    %c0_24 = arith.constant 0 : index
    %34 = vector.load %arg3[%c0_21, %c1_22, %c0_23, %c0_24] : memref<1x3x8x128xf32, #tpu.memory_space<vmem>>, vector<1x1x8x128xf32>
    %35 = vector.shape_cast %34 : vector<1x1x8x128xf32> to vector<8x128xf32>
    %36 = vector.shape_cast %33 : vector<8x128xf32> to vector<1x1x8x128xf32>
    tpu.vector_store %arg3[%c0_21, %c1_22, %c0_23, %c0_24], %36 {strides = array<i32>} : memref<1x3x8x128xf32, #tpu.memory_space<vmem>>, vector<1x1x8x128xf32>,
    %cst_25 = arith.constant 0.0402530096 : f32
    %37 = vector.broadcast %cst_25 : f32 to vector<8x128xf32>
    %38 = arith.mulf %37, %4 : vector<8x128xf32>
    %cst_26 = arith.constant 0.00980939529 : f32
    %39 = vector.broadcast %cst_26 : f32 to vector<8x128xf32>
    %40 = arith.mulf %39, %9 : vector<8x128xf32>
    %41 = arith.addf %38, %40 : vector<8x128xf32>
    %cst_27 = arith.constant -0.11390011 : f32
    %42 = vector.broadcast %cst_27 : f32 to vector<8x128xf32>
    %43 = arith.mulf %42, %14 : vector<8x128xf32>
    %44 = arith.addf %41, %43 : vector<8x128xf32>
    %c0_28 = arith.constant 0 : index
    %c2_29 = arith.constant 2 : index
    %c0_30 = arith.constant 0 : index
    %c0_31 = arith.constant 0 : index
    %45 = vector.load %arg3[%c0_28, %c2_29, %c0_30, %c0_31] : memref<1x3x8x128xf32, #tpu.memory_space<vmem>>, vector<1x1x8x128xf32>
    %46 = vector.shape_cast %45 : vector<1x1x8x128xf32> to vector<8x128xf32>
    %47 = vector.shape_cast %44 : vector<8x128xf32> to vector<1x1x8x128xf32>
    tpu.vector_store %arg3[%c0_28, %c2_29, %c0_30, %c0_31], %47 {strides = array<i32>} : memref<1x3x8x128xf32, #tpu.memory_space<vmem>>, vector<1x1x8x128xf32>,
    return
  }
  func.func @transform_0(%arg0: i32, %arg1: i32) -> (i32, i32, i32, i32) {
    %c0_i32 = arith.constant 0 : i32
    %c0_i32_0 = arith.constant 0 : i32
    %c0_i32_1 = arith.constant 0 : i32
    return %arg0, %c0_i32, %arg1, %c0_i32_0 : i32, i32, i32, i32
  }
  func.func @transform_1(%arg0: i32, %arg1: i32) -> (i32, i32, i32, i32) {
    %c0_i32 = arith.constant 0 : i32
    %c0_i32_0 = arith.constant 0 : i32
    %c0_i32_1 = arith.constant 0 : i32
    return %arg0, %c0_i32, %arg1, %c0_i32_0 : i32, i32, i32, i32
  }
}

</mosaic_0001>

<llo_original>
// kernel: tpu_custom_call.1
$region0: #{tpu_custom_call.1}
  #allocation0 [shape = 'u32[]', space=smem, size = 0x4, offset = 0x4, fixed_abs, tag = 'smem constant byte address 0x4 - core index']
  #allocation1 [shape = 'u32[144,128]{1,0:T(1,128)}', space=vmem, size = 0x12000, scoped, tag = 'internal scratch']
  %s0 = inlined_call_operand.hbm [shape: f32[2,3,8,128], index: 0, kind: input, shape index: {}]
  %s1 = inlined_call_operand.hbm [shape: f32[2,3,8,128], index: 1, kind: output, shape index: {}]
  %s2 = sld [smem:[#allocation0]]
  $region41: #{tpu_custom_call.1} parent=0
    _
  %s4 = ssub.s32 1, %s2
  %s5 = scalar_select 0, %s4, %s2
  $region1: #{tpu_custom_call.1} parent=0
    #allocation2 [shape = 'u8[24576]{0}', space=vmem, size = 0x6000, scoped, tag = 'input window, operand 0']
    #allocation3 [shape = 's32[2]{0}', space=sflag, size = 0x8, scoped, tag = 'scoped memory for tpu_custom_call.1']
    #allocation4 [shape = 's32[2]{0}', space=sflag, size = 0x8, scoped, tag = 'scoped memory for tpu_custom_call.1']
    #allocation5 [shape = 'u8[24576]{0}', space=vmem, size = 0x6000, scoped, tag = 'output window, operand 0']
    %6 = vsyncpa [#allocation3], 0
    %s7 = scalar_lea.sflag [#allocation3], 1
    %8 = vsyncpa %s7, 0
    %9 = vsyncpa [#allocation4], 0
    %s10 = scalar_lea.sflag [#allocation4], 1
    %11 = vsyncpa %s10, 0
    loop: start=0, step=1, limit=4
    $region2: #{tpu_custom_call.1} parent=1 // loop_pre_header
      _
    $region3: #{tpu_custom_call.1} parent=1 // loop_header
      %s13 = sphi 0, %s17
      %p14 = scmp.ge.s32.totalorder %s13, 4
      %s20 = sphi 0, %s32
      %s21 = sphi 0, %s28
      %s22 = sphi 0, %s20
      %s23 = sphi 0, %s21
      %s24 = sphi 0, %s22
      %s25 = sphi 0, %s23
      %s37 = sphi 0, %s39
      %s40 = sphi 0, %s37
      %s41 = sphi 0, %s40
      %s57 = sphi 0, %s41
      %s65 = sphi 0, %s67
      %s68 = sphi 0, %s65
      %s69 = sphi 0, %s68
      %s85 = sphi 0, %s69
    $region4: #{tpu_custom_call.1} parent=1 // loop_header_branch
      %16 = sbr.rel (%p14) target = $region8
    $region5: #{tpu_custom_call.1} parent=1 // loop_body
      %s18 = ssub.s32 %s13, 1
      %s19 = ssub.s32 %s13, 2
      %s26 = sadd.s32 1, %s21
      %p27 = scmp.ge.s32.totalorder %s26, 1
      %s28 = scalar_select %p27, 0, %s26
      %s29 = sadd.s32 1, %s20
      %s30 = scalar_select %p27, %s29, %s20
      %p31 = scmp.ge.s32.totalorder %s30, 2
      %s32 = scalar_select %p31, 0, %s30
      %s33 = ssub.s32 %s20, %s32
      %s34 = ssub.s32 %s21, %s28
      %s35 = sor.u32 %s33, %s34
      %p36 = scmp.eq.s32.totalorder %s35, 0
      %s38 = sadd.s32 %s37, 1
      %s39 = scalar_select %p36, %s37, %s38
      %p42 = pneg %p36
      %p43 = scmp.eq.s32.totalorder %s13, 1
      %p44 = por %p42, %p43
      %p45 = scmp.ne.s32.totalorder %s37, %s40
      %p46 = scmp.eq.s32.totalorder %s13, 0
      %p47 = por %p45, %p46
      %p48 = scmp.ne.s32.totalorder %s37, %s40
      %p49 = scmp.eq.s32.totalorder %s18, 1
      %p50 = por %p48, %p49
      %p51 = scmp.ne.s32.totalorder %s40, %s41
      %p52 = scmp.eq.s32.totalorder %s18, 0
      %p53 = por %p51, %p52
      %p54 = scmp.ne.s32.totalorder %s40, %s41
      %p55 = scmp.eq.s32.totalorder %s19, 1
      %p56 = por %p54, %p55
      %p58 = scmp.ne.s32.totalorder %s41, %s57
      %p59 = scmp.eq.s32.totalorder %s19, 0
      %p60 = por %p58, %p59
      %s61 = ssub.s32 %s20, %s32
      %s62 = ssub.s32 %s21, %s28
      %s63 = sor.u32 %s61, %s62
      %p64 = scmp.eq.s32.totalorder %s63, 0
      %s66 = sadd.s32 %s65, 1
      %s67 = scalar_select %p64, %s65, %s66
      %p70 = pneg %p64
      %p71 = scmp.eq.s32.totalorder %s13, 1
      %p72 = por %p70, %p71
      %p73 = scmp.ne.s32.totalorder %s65, %s68
      %p74 = scmp.eq.s32.totalorder %s13, 0
      %p75 = por %p73, %p74
      %p76 = scmp.ne.s32.totalorder %s65, %s68
      %p77 = scmp.eq.s32.totalorder %s18, 1
      %p78 = por %p76, %p77
      %p79 = scmp.ne.s32.totalorder %s68, %s69
      %p80 = scmp.eq.s32.totalorder %s18, 0
      %p81 = por %p79, %p80
      %p82 = scmp.ne.s32.totalorder %s68, %s69
      %p83 = scmp.eq.s32.totalorder %s19, 1
      %p84 = por %p82, %p83
      %p86 = scmp.ne.s32.totalorder %s69, %s85
      %p87 = scmp.eq.s32.totalorder %s19, 0
      %p88 = por %p86, %p87
      %p89 = scmp.le.s32.totalorder 1, %s13
      %p90 = scmp.lt.s32.totalorder %s13, 3
      %p91 = pnand %p89, %p90
      %p92 = pneg %p91
      // Predicated region
      $region9: #{tpu_custom_call.1} parent=5 // pred_check
        _
      $region10: #{tpu_custom_call.1} parent=5 // pred_check_branch
        %94 = sbr.rel (%p91) target = $region12
      $region11: #{tpu_custom_call.1} parent=5 // pred_region
        %s95 = ssub.s32 %s13, 1
      $region12: #{tpu_custom_call.1} parent=5 // pred_fallthru
        _
      %p96 = scmp.lt.s32.totalorder %s13, 2
      // Predicated region
      $region13: #{tpu_custom_call.1} parent=5 // pred_check
        %p97 = pneg %p96
      $region14: #{tpu_custom_call.1} parent=5 // pred_check_branch
        %99 = sbr.rel (%p97) target = $region16
      $region15: #{tpu_custom_call.1} parent=5 // pred_region
        // Predicated region
        $region17: #{tpu_custom_call.1} parent=15 // pred_check
          %p100 = pneg %p47
        $region18: #{tpu_custom_call.1} parent=15 // pred_check_branch
          %102 = sbr.rel (%p100) target = $region20
        $region19: #{tpu_custom_call.1} parent=15 // pred_region
          %s103 = sand.u32 %s37, 1
          %s104 = scalar_lea.sflag [#allocation3], %s103
          %s105 = sand.u32 %s37, 1
          %s106 = smul.addr %s105, 24
          %s107 = scalar_lea.vmem [#allocation2], %s106
          %s109 = ssub.s32 384, 384
          %110 = vsyncadd %s104, %s109
          %s111 = smul.addr %s20, 3
          %s112 = sadd.s32 %s21, %s111
          %s113 = smul.addr %s112, 128
          %s114 = scalar_lea.hbm %s0, %s113
          %s115 = sshll.u32 %s107, 4
          %s116 = int_to_ptr.vmem [resolvable:$true] %s115
          %121 = dma.hbm_to_vmem [thread:$0]  %s114, 384, %s116, %s104, 128, 128, 8
        $region20: #{tpu_custom_call.1} parent=15 // pred_fallthru
          _
      $region16: #{tpu_custom_call.1} parent=5 // pred_fallthru
        _
      %p122 = scmp.le.s32.totalorder 1, %s13
      %p123 = scmp.lt.s32.totalorder %s13, 3
      %p124 = pnand %p122, %p123
      %p125 = pneg %p124
      // Predicated region
      $region21: #{tpu_custom_call.1} parent=5 // pred_check
        _
      $region22: #{tpu_custom_call.1} parent=5 // pred_check_branch
        %127 = sbr.rel (%p124) target = $region24
      $region23: #{tpu_custom_call.1} parent=5 // pred_region
        %s128 = ssub.s32 %s13, 1
        %s129 = sand.u32 %s40, 1
        %s130 = scalar_lea.sflag [#allocation3], %s129
        %s131 = sand.u32 %s40, 1
        %s132 = smul.addr %s131, 24
        %s133 = scalar_lea.vmem [#allocation2], %s132
        // Predicated region
        $region25: #{tpu_custom_call.1} parent=23 // pred_check
          %p134 = pneg %p53
        $region26: #{tpu_custom_call.1} parent=23 // pred_check_branch
          %136 = sbr.rel (%p134) target = $region28
        $region27: #{tpu_custom_call.1} parent=23 // pred_region
          %137 = dma.done %s130, 384
        $region28: #{tpu_custom_call.1} parent=23 // pred_fallthru
          _
        %s138 = sand.u32 %s40, 1
        %s139 = scalar_lea.sflag [#allocation3], %s138
        %s140 = sand.u32 %s40, 1
        %s141 = smul.addr %s140, 24
        %s142 = scalar_lea.vmem [#allocation2], %s141
        %p143 = pneg %p53
        %p144 = pneg %p50
        %p145 = pneg %p81
        %p146 = pneg %p78
        %s147 = sand.u32 %s68, 1
        %s148 = scalar_lea.sflag [#allocation4], %s147
        %s149 = sand.u32 %s68, 1
        %s150 = smul.addr %s149, 24
        %s151 = scalar_lea.vmem [#allocation5], %s150
        %v152 = vld [vmem:[%s133] sm:$0xff]
        %v153 = vmax.f32 %v152, 1e-06
        %v154 = vlog2.pop %v153
        %v155 = vmul.f32 %v154, 0.6931472
        %s156 = scalar_lea.vmem %s133, 8 [#allocation2]
        %v157 = vld [vmem:[%s156] sm:$0xff]
        %v158 = vmax.f32 %v157, 1e-06
        %v159 = vlog2.pop %v158
        %v160 = vmul.f32 %v159, 0.6931472
        %s161 = scalar_lea.vmem %s133, 16 [#allocation2]
        %v162 = vld [vmem:[%s161] sm:$0xff]
        %v163 = vmax.f32 %v162, 1e-06
        %v164 = vlog2.pop %v163
        %v165 = vmul.f32 %v164, 0.6931472
        %v166 = vmul.f32 %v155, -0.13593294
        %v167 = vmul.f32 %v160, 0.0047705844
        %v168 = vadd.f32 %v166, %v167
        %v169 = vmul.f32 %v165, 0.043567512
        %v170 = vadd.f32 %v168, %v169
        %171 = vst [vmem:[%s151] sm:$0xff] %v170
        %v172 = vmul.f32 %v155, 0.07293822
        %v173 = vmul.f32 %v160, -0.08213452
        %v174 = vadd.f32 %v172, %v173
        %v175 = vmul.f32 %v165, 0.034773536
        %v176 = vadd.f32 %v174, %v175
        %s177 = scalar_lea.vmem %s151, 8 [#allocation5]
        %178 = vst [vmem:[%s177] sm:$0xff] %v176
        %v179 = vmul.f32 %v155, 0.04025301
        %v180 = vmul.f32 %v160, 0.009809395
        %v181 = vadd.f32 %v179, %v180
        %v182 = vmul.f32 %v165, -0.11390011
        %v183 = vadd.f32 %v181, %v182
        %s184 = scalar_lea.vmem %s151, 16 [#allocation5]
        %185 = vst [vmem:[%s184] sm:$0xff] %v183
        %s186 = sand.u32 %s68, 1
        %s187 = scalar_lea.sflag [#allocation4], %s186
        %s188 = sand.u32 %s68, 1
        %s189 = smul.addr %s188, 24
        %s190 = scalar_lea.vmem [#allocation5], %s189
        // Predicated region
        $region29: #{tpu_custom_call.1} parent=23 // pred_check
          %p191 = pneg %p78
        $region30: #{tpu_custom_call.1} parent=23 // pred_check_branch
          %193 = sbr.rel (%p191) target = $region32
        $region31: #{tpu_custom_call.1} parent=23 // pred_region
          %s195 = ssub.s32 384, 384
          %196 = vsyncadd %s187, %s195
          %s197 = smul.addr %s22, 3
          %s198 = sadd.s32 %s23, %s197
          %s199 = smul.addr %s198, 128
          %s200 = scalar_lea.hbm %s1, %s199
          %s201 = sshll.u32 %s190, 4
          %s202 = int_to_ptr.vmem [resolvable:$true] %s201
          %207 = dma.vmem_to_hbm [thread:$0]  %s202, 384, %s200, %s187, 128, 128, 8
        $region32: #{tpu_custom_call.1} parent=23 // pred_fallthru
          _
      $region24: #{tpu_custom_call.1} parent=5 // pred_fallthru
        _
      %p208 = scmp.le.s32.totalorder 2, %s13
      // Predicated region
      $region33: #{tpu_custom_call.1} parent=5 // pred_check
        %p209 = pneg %p208
      $region34: #{tpu_custom_call.1} parent=5 // pred_check_branch
        %211 = sbr.rel (%p209) target = $region36
      $region35: #{tpu_custom_call.1} parent=5 // pred_region
        %s212 = ssub.s32 %s13, 2
        // Predicated region
        $region37: #{tpu_custom_call.1} parent=35 // pred_check
          %p213 = pneg %p84
        $region38: #{tpu_custom_call.1} parent=35 // pred_check_branch
          %215 = sbr.rel (%p213) target = $region40
        $region39: #{tpu_custom_call.1} parent=35 // pred_region
          %s216 = sand.u32 %s69, 1
          %s217 = scalar_lea.sflag [#allocation4], %s216
          %s218 = sand.u32 %s69, 1
          %s219 = smul.addr %s218, 24
          %s220 = scalar_lea.vmem [#allocation5], %s219
          %221 = dma.done %s217, 384
        $region40: #{tpu_custom_call.1} parent=35 // pred_fallthru
          _
      $region36: #{tpu_custom_call.1} parent=5 // pred_fallthru
        _
    $region6: #{tpu_custom_call.1} parent=1 // loop_footer
      %s17 = sadd.s32 1, %s13
    $region7: #{tpu_custom_call.1} parent=1 // loop_footer_branch
      %12 = sbr.rel target = $region3
    $region8: #{tpu_custom_call.1} parent=1 // loop_exit
      _
    %222 = vsyncpa [#allocation3], 1
    %s223 = scalar_lea.sflag [#allocation3], 1
    %224 = vsyncpa %s223, 1
    %225 = vsyncpa [#allocation4], 1
    %s226 = scalar_lea.sflag [#allocation4], 1
    %227 = vsyncpa %s226, 1

</llo_original>
